<compile_context>
chip_gen: v7x
topology: tpu7x:2x2x1
jax: 0.10.0
libtpu: 0.0.40
codegen_flags: <defaults>
</compile_context>

<pallas_src>
import jax
import jax.numpy as jnp
from jax.experimental import pallas as pl
from jax.experimental.pallas import tpu as pltpu

INPUT_DIM = 3
FEAT_PAD = 8            # conv1 fan-in padded to a sublane multiple (zero rows in W1)
CONV_HIDDEN = 64
MLP_HIDDEN = 128
NUM_CLUSTERS = 15
OUT_PAD = 128           # lane-dense output width (pad lanes get -1e30 bias)
N_NODES = 16
BATCH = 4
NEG_INF = -1e30


def _elu(x):
    # ELU with alpha = 1.0 (matches F.elu / nn.ELU defaults).  exp argument is
    # clamped at 0 so large positive x never produces +inf intermediates that
    # the where() then discards.  exp(x)-1 (not expm1): expm1 has no
    # guaranteed Mosaic lowering; ~1e-7-level loss for small negative x accepted.
    return jnp.where(x > 0, x, jnp.exp(jnp.minimum(x, 0.0)) - 1.0)


def gnnpool_kernel(a_ref, x_ref, w1_ref, w2_ref, wm1_ref, wm2_ref, b_ref, s_ref):
    # a_ref: (G*N, N) int8 stacked per-graph adjacency rows (G graphs folded
    #        into this grid step), 0/1 edge values, no self-loops.
    GN, N = a_ref.shape
    G = GN // N

    # int8 HBM stream -> bf16 MXU operand (VPU widen sits in slack).
    A = a_ref[...].astype(jnp.bfloat16)                                  # (G*N, N)

    # Degrees on the MXU: rowsum(A) via A @ ones, exact f32 accumulation for
    # 0/1 edges; +1 accounts for the (fused) self-loop.
    ones_col = jnp.ones((N, 1), jnp.bfloat16)
    deg = jnp.dot(A, ones_col, preferred_element_type=jnp.float32) + 1.0  # (G*N, 1)
    dinv = jax.lax.rsqrt(deg)                                             # EUP

    def propagate(h):
        # h: (G*N, F) f32  ->  D^{-1/2}(A+I)D^{-1/2} h, per graph, stacked.
        # Reassociated: dinv * (A @ (dinv*h) + dinv*h)   (no dinv^2 term).
        pre = dinv * h
        pre_b = pre.astype(jnp.bfloat16)
        ah = jnp.concatenate(
            [jnp.dot(A[g * N:(g + 1) * N, :], pre_b[g * N:(g + 1) * N, :],
                     preferred_element_type=jnp.float32)
             for g in range(G)],
            axis=0)                                                       # (G*N, F) f32
        return dinv * (ah + pre)

    # Packed biases: row 0 -> b1, 1 -> b2, 2 -> bm1, 3 -> bm2 (pad lanes -1e30).
    b1 = b_ref[0:1, :CONV_HIDDEN]
    b2 = b_ref[1:2, :CONV_HIDDEN]
    bm1 = b_ref[2:3, :MLP_HIDDEN]
    bm2 = b_ref[3:4, :]                                                   # (1, 128)

    x = x_ref[...]                                                        # (G*N, FEAT_PAD) f32

    # GCNConv 1 (reassociated): Â (X W1) + b1, then ELU.
    xw = jnp.dot(x.astype(jnp.bfloat16), w1_ref[...],
                 preferred_element_type=jnp.float32)                      # (G*N, 64)
    h = _elu(propagate(xw) + b1)

    # GCNConv 2: Â (H W2) + b2, then ELU.
    hw = jnp.dot(h.astype(jnp.bfloat16), w2_ref[...],
                 preferred_element_type=jnp.float32)                      # (G*N, 64)
    h = _elu(propagate(hw) + b2)

    # MLP: Linear -> ELU -> Dropout(identity in eval) -> Linear.
    m = _elu(jnp.dot(h.astype(jnp.bfloat16), wm1_ref[...],
                     preferred_element_type=jnp.float32) + bm1)           # (G*N, 128)
    logits = jnp.dot(m.astype(jnp.bfloat16), wm2_ref[...],
                     preferred_element_type=jnp.float32) + bm2            # (G*N, 128)

    # Softmax over the cluster axis (dim=1).  Pad lanes hold -1e30 bias so
    # their exps are exactly 0; exact divide so rows sum to 1 in f32.
    mx = jnp.max(logits, axis=1, keepdims=True)
    e = jnp.exp(logits - mx)
    s_ref[...] = e / jnp.sum(e, axis=1, keepdims=True)


def pack_params(params):
    """One-time parameter preparation: bf16 weights (padded) + packed bias tile."""
    w1, b1, w2, b2, wm1, bm1, wm2, bm2 = params
    # Pad conv1 fan-in 3 -> FEAT_PAD with zero rows; pad mlp2 fan-out 15 -> 128
    # with zero columns (pad-lane logits come entirely from the -1e30 bias).
    w1p = jnp.zeros((FEAT_PAD, CONV_HIDDEN), jnp.float32).at[:INPUT_DIM, :].set(w1)
    wm2p = jnp.zeros((MLP_HIDDEN, OUT_PAD), jnp.float32).at[:, :NUM_CLUSTERS].set(wm2)
    w1b, w2b, wm1b, wm2b = (w.astype(jnp.bfloat16) for w in (w1p, w2, wm1, wm2p))

    bias_pack = jnp.zeros((4, 128), jnp.float32)
    bias_pack = bias_pack.at[0, :CONV_HIDDEN].set(b1[0])
    bias_pack = bias_pack.at[1, :CONV_HIDDEN].set(b2[0])
    bias_pack = bias_pack.at[2, :MLP_HIDDEN].set(bm1[0])
    bm2_row = jnp.full((OUT_PAD,), NEG_INF, jnp.float32).at[:NUM_CLUSTERS].set(bm2[0])
    bias_pack = bias_pack.at[3, :].set(bm2_row)
    return w1b, w2b, wm1b, wm2b, bias_pack


def gnnpool_forward(A, x, packed_params, graphs_per_step=None):
    """A: (B, N, N) 0/1 adjacency WITHOUT self-loops.
    x: (B, N, input_dim) node features.  Returns S: (B, N, num_clusters)."""
    w1b, w2b, wm1b, wm2b, bias_pack = packed_params
    B, N, _ = A.shape
    if graphs_per_step is None:
        # Fold graphs to raise matmul M / cut grid steps, but keep >= 2 grid
        # steps (when B >= 2) so v7x megacore still gets both TensorCores.
        graphs_per_step = max(1, B // 2)
    G = graphs_per_step
    assert B % G == 0, "graphs_per_step must divide the batch"
    steps = B // G

    # int8 adjacency stream (0/1 edges are exact), stacked row-wise.
    A_i8 = A.astype(jnp.int8).reshape(B * N, N)
    # Stacked, sublane-padded feature slab (zero lanes beyond INPUT_DIM; W1's
    # matching zero rows make the padding exact).
    x2 = jnp.zeros((B * N, FEAT_PAD), jnp.float32)
    x2 = x2.at[:, :INPUT_DIM].set(x.reshape(B * N, INPUT_DIM))

    const2 = lambda i: (0, 0)

    out = pl.pallas_call(
        gnnpool_kernel,
        out_shape=jax.ShapeDtypeStruct((B * N, OUT_PAD), jnp.float32),
        grid_spec=pltpu.PrefetchScalarGridSpec(
            num_scalar_prefetch=0,
            grid=(steps,),
            in_specs=[
                pl.BlockSpec((G * N, N), lambda i: (i, 0)),         # adjacency (int8)
                pl.BlockSpec((G * N, FEAT_PAD), lambda i: (i, 0)),  # features (f32)
                pl.BlockSpec(w1b.shape, const2),                    # weights stay resident
                pl.BlockSpec(w2b.shape, const2),
                pl.BlockSpec(wm1b.shape, const2),
                pl.BlockSpec(wm2b.shape, const2),
                pl.BlockSpec(bias_pack.shape, const2),              # packed biases
            ],
            out_specs=pl.BlockSpec((G * N, OUT_PAD), lambda i: (i, 0)),
        ),
        compiler_params=pltpu.CompilerParams(
            dimension_semantics=("parallel",),                      # shard steps across TCs
        ),
    )(A_i8, x2, w1b, w2b, wm1b, wm2b, bias_pack)

    # Lane-dense kernel output -> real clusters only.
    return out[:, :NUM_CLUSTERS].reshape(B, N, NUM_CLUSTERS)


def gnnpool_reference(A, x, params):
    """Pure-JAX f32 reference of the same forward pass (for validation)."""
    w1, b1, w2, b2, wm1, bm1, wm2, bm2 = params
    deg = jnp.sum(A, axis=-1) + 1.0                      # (B, N)
    dinv = 1.0 / jnp.sqrt(deg)                           # (B, N)

    def prop(h):                                         # (B, N, F)
        hs = dinv[..., None] * h
        return dinv[..., None] * (jnp.einsum('bij,bjf->bif', A, hs) + hs)

    def elu(v):
        return jnp.where(v > 0, v, jnp.exp(jnp.minimum(v, 0.0)) - 1.0)

    h = elu(prop(x @ w1) + b1)
    h = elu(prop(h @ w2) + b2)
    m = elu(h @ wm1 + bm1)
    logits = m @ wm2 + bm2
    return jax.nn.softmax(logits, axis=-1)


def init_params(key):
    ks = jax.random.split(key, 8)

    def lin(k, fan_in, fan_out):
        scale = 1.0 / jnp.sqrt(jnp.float32(fan_in))
        w = jax.random.uniform(k, (fan_in, fan_out), jnp.float32, -scale, scale)
        b = jnp.zeros((1, fan_out), jnp.float32)
        return w, b

    w1, b1 = lin(ks[0], INPUT_DIM, CONV_HIDDEN)       # conv1 weight/bias
    w2, b2 = lin(ks[1], CONV_HIDDEN, CONV_HIDDEN)     # conv2 weight/bias
    wm1, bm1 = lin(ks[2], CONV_HIDDEN, MLP_HIDDEN)    # mlp linear 1
    wm2, bm2 = lin(ks[3], MLP_HIDDEN, NUM_CLUSTERS)   # mlp linear 2
    # deterministic non-zero biases
    b1 = b1 + 0.01
    bm1 = bm1 + 0.01
    return (w1, b1, w2, b2, wm1, bm1, wm2, bm2)


if __name__ == "__main__":
    key = jax.random.PRNGKey(0)
    kp, kx = jax.random.split(key)

    params = init_params(kp)
    packed = pack_params(params)

    # Synthetic batch of graphs: ring over N_NODES nodes (symmetric, 0/1
    # edges, no self-loops).
    idx = jnp.arange(N_NODES)
    ring = jnp.zeros((N_NODES, N_NODES), jnp.float32)
    ring = ring.at[idx, (idx + 1) % N_NODES].set(1.0)
    ring = ring.at[(idx + 1) % N_NODES, idx].set(1.0)
    A = jnp.broadcast_to(ring, (BATCH, N_NODES, N_NODES))

    # Node features per graph.
    x = jax.random.normal(kx, (BATCH, N_NODES, INPUT_DIM), jnp.float32)

    S = gnnpool_forward(A, x, packed)
    S = jax.block_until_ready(S)

    assert S.shape == (BATCH, N_NODES, NUM_CLUSTERS)
    assert bool(jnp.all(jnp.isfinite(S)))
    assert bool(jnp.all(S >= 0.0))
    # Exact divide in the kernel softmax -> rows sum to 1 within f32 rounding.
    assert bool(jnp.all(jnp.abs(jnp.sum(S, axis=-1) - 1.0) < 1e-4))
    # Loose agreement with the pure-f32 reference (kernel uses bf16 MXU operands).
    S_ref = gnnpool_reference(A, x, params)
    assert bool(jnp.max(jnp.abs(S - S_ref)) < 5e-2)
    print("KERNEL_OK")
</pallas_src>

<mosaic_0001>
module attributes {stable_mosaic.version = 11 : i64} {
  func.func @gnnpool_kernel(%arg0: i32, %arg1: memref<32x16xi8, #tpu.memory_space<vmem>>, %arg2: memref<32x8xf32, #tpu.memory_space<vmem>>, %arg3: memref<8x64xbf16, #tpu.memory_space<vmem>>, %arg4: memref<64x64xbf16, #tpu.memory_space<vmem>>, %arg5: memref<64x128xbf16, #tpu.memory_space<vmem>>, %arg6: memref<128x128xbf16, #tpu.memory_space<vmem>>, %arg7: memref<4x128xf32, #tpu.memory_space<vmem>>, %arg8: memref<32x128xf32, #tpu.memory_space<vmem>>) attributes {dimension_semantics = [#tpu.dimension_semantics<parallel>], iteration_bounds = array<i64: 2>, scalar_prefetch = 0 : i64, scratch_operands = 0 : i64, tpu.core_type = #tpu.core_type<tc>, window_params = [{transform_indices = @transform_0, window_bounds = array<i64: 32, 16>}, {transform_indices = @transform_1, window_bounds = array<i64: 32, 8>}, {pipeline_mode = #tpu.pipeline_mode<synchronous>, transform_indices = @transform_2, window_bounds = array<i64: 8, 64>}, {pipeline_mode = #tpu.pipeline_mode<synchronous>, transform_indices = @transform_3, window_bounds = array<i64: 64, 64>}, {pipeline_mode = #tpu.pipeline_mode<synchronous>, transform_indices = @transform_4, window_bounds = array<i64: 64, 128>}, {pipeline_mode = #tpu.pipeline_mode<synchronous>, transform_indices = @transform_5, window_bounds = array<i64: 128, 128>}, {pipeline_mode = #tpu.pipeline_mode<synchronous>, transform_indices = @transform_6, window_bounds = array<i64: 4, 128>}, {transform_indices = @transform_7, window_bounds = array<i64: 32, 128>}]} {
    %c0 = arith.constant 0 : index
    %c0_0 = arith.constant 0 : index
    %0 = vector.load %arg1[%c0, %c0_0] : memref<32x16xi8, #tpu.memory_space<vmem>>, vector<32x16xi8>
    %1 = arith.sitofp %0 : vector<32x16xi8> to vector<32x16xbf16>
    %cst = arith.constant 1.000000e+00 : bf16
    %2 = vector.broadcast %cst : bf16 to vector<16x1xbf16>
    %cst_1 = arith.constant dense<0.000000e+00> : vector<32x1xf32>
    %3 = tpu.matmul %1, %2, %cst_1 {dimension_numbers = #tpu.dot_dimension_numbers<[1], [0], [0], [1], [0, 0, 1, 1], [], []>} : vector<32x16xbf16>, vector<16x1xbf16>, vector<32x1xf32> -> vector<32x1xf32>
    %cst_2 = arith.constant 1.000000e+00 : f32
    %4 = vector.broadcast %cst_2 : f32 to vector<32x1xf32>
    %5 = arith.addf %3, %4 : vector<32x1xf32>
    %6 = math.rsqrt %5 : vector<32x1xf32>
    %c0_3 = arith.constant 0 : index
    %c0_4 = arith.constant 0 : index
    %7 = vector.load %arg7[%c0_3, %c0_4] : memref<4x128xf32, #tpu.memory_space<vmem>>, vector<1x64xf32>
    %c1 = arith.constant 1 : index
    %c0_5 = arith.constant 0 : index
    %8 = vector.load %arg7[%c1, %c0_5] : memref<4x128xf32, #tpu.memory_space<vmem>>, vector<1x64xf32>
    %c2 = arith.constant 2 : index
    %c0_6 = arith.constant 0 : index
    %9 = vector.load %arg7[%c2, %c0_6] : memref<4x128xf32, #tpu.memory_space<vmem>>, vector<1x128xf32>
    %c3 = arith.constant 3 : index
    %c0_7 = arith.constant 0 : index
    %10 = vector.load %arg7[%c3, %c0_7] : memref<4x128xf32, #tpu.memory_space<vmem>>, vector<1x128xf32>
    %c0_8 = arith.constant 0 : index
    %c0_9 = arith.constant 0 : index
    %11 = vector.load %arg2[%c0_8, %c0_9] : memref<32x8xf32, #tpu.memory_space<vmem>>, vector<32x8xf32>
    %12 = arith.truncf %11 : vector<32x8xf32> to vector<32x8xbf16>
    %c0_10 = arith.constant 0 : index
    %c0_11 = arith.constant 0 : index
    %13 = vector.load %arg3[%c0_10, %c0_11] : memref<8x64xbf16, #tpu.memory_space<vmem>>, vector<8x64xbf16>
    %cst_12 = arith.constant dense<0.000000e+00> : vector<32x64xf32>
    %14 = tpu.matmul %12, %13, %cst_12 {dimension_numbers = #tpu.dot_dimension_numbers<[1], [0], [0], [1], [0, 0, 1, 1], [], []>} : vector<32x8xbf16>, vector<8x64xbf16>, vector<32x64xf32> -> vector<32x64xf32>
    %15 = vector.broadcast %6 : vector<32x1xf32> to vector<32x64xf32>
    %16 = arith.mulf %15, %14 : vector<32x64xf32>
    %17 = arith.truncf %16 : vector<32x64xf32> to vector<32x64xbf16>
    %18 = vector.extract_strided_slice %1 {offsets = [0, 0], sizes = [16, 16], strides = [1, 1]} : vector<32x16xbf16> to vector<16x16xbf16>
    %19 = vector.extract_strided_slice %17 {offsets = [0, 0], sizes = [16, 64], strides = [1, 1]} : vector<32x64xbf16> to vector<16x64xbf16>
    %cst_13 = arith.constant dense<0.000000e+00> : vector<16x64xf32>
    %20 = tpu.matmul %18, %19, %cst_13 {dimension_numbers = #tpu.dot_dimension_numbers<[1], [0], [0], [1], [0, 0, 1, 1], [], []>} : vector<16x16xbf16>, vector<16x64xbf16>, vector<16x64xf32> -> vector<16x64xf32>
    %21 = vector.extract_strided_slice %1 {offsets = [16, 0], sizes = [16, 16], strides = [1, 1]} : vector<32x16xbf16> to vector<16x16xbf16>
    %22 = vector.extract_strided_slice %17 {offsets = [16, 0], sizes = [16, 64], strides = [1, 1]} : vector<32x64xbf16> to vector<16x64xbf16>
    %cst_14 = arith.constant dense<0.000000e+00> : vector<16x64xf32>
    %23 = tpu.matmul %21, %22, %cst_14 {dimension_numbers = #tpu.dot_dimension_numbers<[1], [0], [0], [1], [0, 0, 1, 1], [], []>} : vector<16x16xbf16>, vector<16x64xbf16>, vector<16x64xf32> -> vector<16x64xf32>
    %24 = tpu.concatenate %20, %23 in 0 : vector<16x64xf32>, vector<16x64xf32> -> vector<32x64xf32>
    %25 = arith.addf %24, %16 : vector<32x64xf32>
    %26 = vector.broadcast %6 : vector<32x1xf32> to vector<32x64xf32>
    %27 = arith.mulf %26, %25 : vector<32x64xf32>
    %28 = vector.broadcast %7 : vector<1x64xf32> to vector<32x64xf32>
    %29 = arith.addf %27, %28 : vector<32x64xf32>
    %cst_15 = arith.constant 0.000000e+00 : f32
    %30 = vector.broadcast %cst_15 : f32 to vector<32x64xf32>
    %31 = arith.cmpf ogt, %29, %30 : vector<32x64xf32>
    %cst_16 = arith.constant 0.000000e+00 : f32
    %32 = vector.broadcast %cst_16 : f32 to vector<32x64xf32>
    %33 = arith.minimumf %29, %32 : vector<32x64xf32>
    %34 = math.exp %33 : vector<32x64xf32>
    %cst_17 = arith.constant 1.000000e+00 : f32
    %35 = vector.broadcast %cst_17 : f32 to vector<32x64xf32>
    %36 = arith.subf %34, %35 : vector<32x64xf32>
    %37 = arith.select %31, %29, %36 : vector<32x64xi1>, vector<32x64xf32>
    %38 = arith.truncf %37 : vector<32x64xf32> to vector<32x64xbf16>
    %c0_18 = arith.constant 0 : index
    %c0_19 = arith.constant 0 : index
    %39 = vector.load %arg4[%c0_18, %c0_19] : memref<64x64xbf16, #tpu.memory_space<vmem>>, vector<64x64xbf16>
    %cst_20 = arith.constant dense<0.000000e+00> : vector<32x64xf32>
    %40 = tpu.matmul %38, %39, %cst_20 {dimension_numbers = #tpu.dot_dimension_numbers<[1], [0], [0], [1], [0, 0, 1, 1], [], []>} : vector<32x64xbf16>, vector<64x64xbf16>, vector<32x64xf32> -> vector<32x64xf32>
    %41 = vector.broadcast %6 : vector<32x1xf32> to vector<32x64xf32>
    %42 = arith.mulf %41, %40 : vector<32x64xf32>
    %43 = arith.truncf %42 : vector<32x64xf32> to vector<32x64xbf16>
    %44 = vector.extract_strided_slice %1 {offsets = [0, 0], sizes = [16, 16], strides = [1, 1]} : vector<32x16xbf16> to vector<16x16xbf16>
    %45 = vector.extract_strided_slice %43 {offsets = [0, 0], sizes = [16, 64], strides = [1, 1]} : vector<32x64xbf16> to vector<16x64xbf16>
    %cst_21 = arith.constant dense<0.000000e+00> : vector<16x64xf32>
    %46 = tpu.matmul %44, %45, %cst_21 {dimension_numbers = #tpu.dot_dimension_numbers<[1], [0], [0], [1], [0, 0, 1, 1], [], []>} : vector<16x16xbf16>, vector<16x64xbf16>, vector<16x64xf32> -> vector<16x64xf32>
    %47 = vector.extract_strided_slice %1 {offsets = [16, 0], sizes = [16, 16], strides = [1, 1]} : vector<32x16xbf16> to vector<16x16xbf16>
    %48 = vector.extract_strided_slice %43 {offsets = [16, 0], sizes = [16, 64], strides = [1, 1]} : vector<32x64xbf16> to vector<16x64xbf16>
    %cst_22 = arith.constant dense<0.000000e+00> : vector<16x64xf32>
    %49 = tpu.matmul %47, %48, %cst_22 {dimension_numbers = #tpu.dot_dimension_numbers<[1], [0], [0], [1], [0, 0, 1, 1], [], []>} : vector<16x16xbf16>, vector<16x64xbf16>, vector<16x64xf32> -> vector<16x64xf32>
    %50 = tpu.concatenate %46, %49 in 0 : vector<16x64xf32>, vector<16x64xf32> -> vector<32x64xf32>
    %51 = arith.addf %50, %42 : vector<32x64xf32>
    %52 = vector.broadcast %6 : vector<32x1xf32> to vector<32x64xf32>
    %53 = arith.mulf %52, %51 : vector<32x64xf32>
    %54 = vector.broadcast %8 : vector<1x64xf32> to vector<32x64xf32>
    %55 = arith.addf %53, %54 : vector<32x64xf32>
    %cst_23 = arith.constant 0.000000e+00 : f32
    %56 = vector.broadcast %cst_23 : f32 to vector<32x64xf32>
    %57 = arith.cmpf ogt, %55, %56 : vector<32x64xf32>
    %cst_24 = arith.constant 0.000000e+00 : f32
    %58 = vector.broadcast %cst_24 : f32 to vector<32x64xf32>
    %59 = arith.minimumf %55, %58 : vector<32x64xf32>
    %60 = math.exp %59 : vector<32x64xf32>
    %cst_25 = arith.constant 1.000000e+00 : f32
    %61 = vector.broadcast %cst_25 : f32 to vector<32x64xf32>
    %62 = arith.subf %60, %61 : vector<32x64xf32>
    %63 = arith.select %57, %55, %62 : vector<32x64xi1>, vector<32x64xf32>
    %64 = arith.truncf %63 : vector<32x64xf32> to vector<32x64xbf16>
    %c0_26 = arith.constant 0 : index
    %c0_27 = arith.constant 0 : index
    %65 = vector.load %arg5[%c0_26, %c0_27] : memref<64x128xbf16, #tpu.memory_space<vmem>>, vector<64x128xbf16>
    %cst_28 = arith.constant dense<0.000000e+00> : vector<32x128xf32>
    %66 = tpu.matmul %64, %65, %cst_28 {dimension_numbers = #tpu.dot_dimension_numbers<[1], [0], [0], [1], [0, 0, 1, 1], [], []>} : vector<32x64xbf16>, vector<64x128xbf16>, vector<32x128xf32> -> vector<32x128xf32>
    %67 = vector.broadcast %9 : vector<1x128xf32> to vector<32x128xf32>
    %68 = arith.addf %66, %67 : vector<32x128xf32>
    %cst_29 = arith.constant 0.000000e+00 : f32
    %69 = vector.broadcast %cst_29 : f32 to vector<32x128xf32>
    %70 = arith.cmpf ogt, %68, %69 : vector<32x128xf32>
    %cst_30 = arith.constant 0.000000e+00 : f32
    %71 = vector.broadcast %cst_30 : f32 to vector<32x128xf32>
    %72 = arith.minimumf %68, %71 : vector<32x128xf32>
    %73 = math.exp %72 : vector<32x128xf32>
    %cst_31 = arith.constant 1.000000e+00 : f32
    %74 = vector.broadcast %cst_31 : f32 to vector<32x128xf32>
    %75 = arith.subf %73, %74 : vector<32x128xf32>
    %76 = arith.select %70, %68, %75 : vector<32x128xi1>, vector<32x128xf32>
    %77 = arith.truncf %76 : vector<32x128xf32> to vector<32x128xbf16>
    %c0_32 = arith.constant 0 : index
    %c0_33 = arith.constant 0 : index
    %78 = vector.load %arg6[%c0_32, %c0_33] : memref<128x128xbf16, #tpu.memory_space<vmem>>, vector<128x128xbf16>
    %cst_34 = arith.constant dense<0.000000e+00> : vector<32x128xf32>
    %79 = tpu.matmul %77, %78, %cst_34 {dimension_numbers = #tpu.dot_dimension_numbers<[1], [0], [0], [1], [0, 0, 1, 1], [], []>} : vector<32x128xbf16>, vector<128x128xbf16>, vector<32x128xf32> -> vector<32x128xf32>
    %80 = vector.broadcast %10 : vector<1x128xf32> to vector<32x128xf32>
    %81 = arith.addf %79, %80 : vector<32x128xf32>
    %cst_35 = arith.constant dense<0xFF800000> : vector<32xf32>
    %82 = vector.multi_reduction <maximumf>, %81, %cst_35 [1] : vector<32x128xf32> to vector<32xf32>
    %83 = vector.shape_cast %82 : vector<32xf32> to vector<32x1xf32>
    %84 = vector.broadcast %83 : vector<32x1xf32> to vector<32x128xf32>
    %85 = arith.subf %81, %84 : vector<32x128xf32>
    %86 = math.exp %85 : vector<32x128xf32>
    %cst_36 = arith.constant dense<0.000000e+00> : vector<32xf32>
    %87 = vector.multi_reduction <add>, %86, %cst_36 [1] : vector<32x128xf32> to vector<32xf32>
    %88 = vector.shape_cast %87 : vector<32xf32> to vector<32x1xf32>
    %89 = vector.broadcast %88 : vector<32x1xf32> to vector<32x128xf32>
    %90 = arith.divf %86, %89 : vector<32x128xf32>
    %c0_37 = arith.constant 0 : index
    %c0_38 = arith.constant 0 : index
    %91 = vector.load %arg8[%c0_37, %c0_38] : memref<32x128xf32, #tpu.memory_space<vmem>>, vector<32x128xf32>
    tpu.vector_store %arg8[%c0_37, %c0_38], %90 {strides = array<i32>} : memref<32x128xf32, #tpu.memory_space<vmem>>, vector<32x128xf32>,
    return
  }
  func.func @transform_0(%arg0: i32) -> (i32, i32) {
    %c0_i32 = arith.constant 0 : i32
    %c0_i32_0 = arith.constant 0 : i32
    return %arg0, %c0_i32 : i32, i32
  }
  func.func @transform_1(%arg0: i32) -> (i32, i32) {
    %c0_i32 = arith.constant 0 : i32
    %c0_i32_0 = arith.constant 0 : i32
    return %arg0, %c0_i32 : i32, i32
  }
  func.func @transform_2(%arg0: i32) -> (i32, i32) {
    %c0_i32 = arith.constant 0 : i32
    %c0_i32_0 = arith.constant 0 : i32
    %c0_i32_1 = arith.constant 0 : i32
    return %c0_i32, %c0_i32_0 : i32, i32
  }
  func.func @transform_3(%arg0: i32) -> (i32, i32) {
    %c0_i32 = arith.constant 0 : i32
    %c0_i32_0 = arith.constant 0 : i32
    %c0_i32_1 = arith.constant 0 : i32
    return %c0_i32, %c0_i32_0 : i32, i32
  }
  func.func @transform_4(%arg0: i32) -> (i32, i32) {
    %c0_i32 = arith.constant 0 : i32
    %c0_i32_0 = arith.constant 0 : i32
    %c0_i32_1 = arith.constant 0 : i32
    return %c0_i32, %c0_i32_0 : i32, i32
  }
  func.func @transform_5(%arg0: i32) -> (i32, i32) {
    %c0_i32 = arith.constant 0 : i32
    %c0_i32_0 = arith.constant 0 : i32
    %c0_i32_1 = arith.constant 0 : i32
    return %c0_i32, %c0_i32_0 : i32, i32
  }
  func.func @transform_6(%arg0: i32) -> (i32, i32) {
    %c0_i32 = arith.constant 0 : i32
    %c0_i32_0 = arith.constant 0 : i32
    %c0_i32_1 = arith.constant 0 : i32
    return %c0_i32, %c0_i32_0 : i32, i32
  }
  func.func @transform_7(%arg0: i32) -> (i32, i32) {
    %c0_i32 = arith.constant 0 : i32
    %c0_i32_0 = arith.constant 0 : i32
    return %arg0, %c0_i32 : i32, i32
  }
}

</mosaic_0001>

<llo_original>
// kernel: tpu_custom_call.1
$region0: #{tpu_custom_call.1}
  #allocation0 [shape = 'u32[]', space=smem, size = 0x4, offset = 0x4, fixed_abs, tag = 'smem constant byte address 0x4 - core index']
  #allocation1 [shape = 'u32[144,128]{1,0:T(1,128)}', space=vmem, size = 0x12000, scoped, tag = 'internal scratch']
  %s0 = inlined_call_operand.vmem [shape: s8[64,16], index: 0, kind: input, shape index: {}]
  %s1 = inlined_call_operand.vmem [shape: f32[64,8], index: 1, kind: input, shape index: {}]
  %s2 = inlined_call_operand.vmem [shape: bf16[8,64], index: 2, kind: input, shape index: {}]
  %s3 = inlined_call_operand.vmem [shape: bf16[64,64], index: 3, kind: input, shape index: {}]
  %s4 = inlined_call_operand.hbm [shape: bf16[64,128], index: 4, kind: input, shape index: {}]
  %s5 = inlined_call_operand.vmem [shape: bf16[128,128], index: 5, kind: input, shape index: {}]
  %s6 = inlined_call_operand.vmem [shape: f32[4,128], index: 6, kind: input, shape index: {}]
  %s7 = inlined_call_operand.hbm [shape: f32[64,128], index: 7, kind: output, shape index: {}]
  %s8 = sld [smem:[#allocation0]]
  $region65: #{tpu_custom_call.1} parent=0
    _
  %s10 = ssub.s32 1, %s8
  %s11 = scalar_select 0, %s10, %s8
  $region1: #{tpu_custom_call.1} parent=0
    #allocation2 [shape = 'u8[16384]{0}', space=vmem, size = 0x4000, scoped, tag = 'input window, operand 4, single buffered']
    #allocation3 [shape = 's32[2]{0}', space=sflag, size = 0x8, scoped, tag = 'scoped memory for tpu_custom_call.1']
    #allocation4 [shape = 's32[2]{0}', space=sflag, size = 0x8, scoped, tag = 'scoped memory for tpu_custom_call.1']
    #allocation5 [shape = 'u8[32768]{0}', space=vmem, size = 0x8000, scoped, tag = 'output window, operand 0']
    %12 = vsyncpa [#allocation3], 0
    %13 = vsyncpa [#allocation4], 0
    %s14 = scalar_lea.sflag [#allocation4], 1
    %15 = vsyncpa %s14, 0
    loop: start=0, step=1, limit=4
    $region2: #{tpu_custom_call.1} parent=1 // loop_pre_header
      _
    $region3: #{tpu_custom_call.1} parent=1 // loop_header
      %s17 = sphi 0, %s21
      %p18 = scmp.ge.s32.totalorder %s17, 4
      %s27 = sphi 0, %s29
      %s30 = sphi 0, %s27
      %s31 = sphi 0, %s30
      %s47 = sphi 0, %s31
      %s53 = sphi 0, %s55
      %s56 = sphi 0, %s53
      %s57 = sphi 0, %s56
      %s73 = sphi 0, %s57
      %s77 = sphi 0, %s77
      %s79 = sphi 0, %s77
      %s80 = sphi 0, %s79
      %s94 = sphi 0, %s80
      %s98 = sphi 0, %s98
      %s100 = sphi 0, %s98
      %s101 = sphi 0, %s100
      %s115 = sphi 0, %s101
      %s119 = sphi 0, %s119
      %s121 = sphi 0, %s119
      %s122 = sphi 0, %s121
      %s136 = sphi 0, %s122
      %s140 = sphi 0, %s140
      %s142 = sphi 0, %s140
      %s143 = sphi 0, %s142
      %s157 = sphi 0, %s143
      %s161 = sphi 0, %s161
      %s163 = sphi 0, %s161
      %s164 = sphi 0, %s163
      %s178 = sphi 0, %s164
      %s184 = sphi 0, %s186
      %s187 = sphi 0, %s184
      %s188 = sphi 0, %s187
      %s204 = sphi 0, %s188
    $region4: #{tpu_custom_call.1} parent=1 // loop_header_branch
      %20 = sbr.rel (%p18) target = $region8
    $region5: #{tpu_custom_call.1} parent=1 // loop_body
      %s22 = ssub.s32 %s17, 1
      %s23 = ssub.s32 %s17, 2
      %s24 = sadd.s32 %s17, 1
      %s25 = ssub.s32 %s17, %s24
      %p26 = scmp.eq.s32.totalorder %s25, 0
      %s28 = sadd.s32 %s27, 1
      %s29 = scalar_select %p26, %s27, %s28
      %p32 = pneg %p26
      %p33 = scmp.eq.s32.totalorder %s17, 1
      %p34 = por %p32, %p33
      %p35 = scmp.ne.s32.totalorder %s27, %s30
      %p36 = scmp.eq.s32.totalorder %s17, 0
      %p37 = por %p35, %p36
      %p38 = scmp.ne.s32.totalorder %s27, %s30
      %p39 = scmp.eq.s32.totalorder %s22, 1
      %p40 = por %p38, %p39
      %p41 = scmp.ne.s32.totalorder %s30, %s31
      %p42 = scmp.eq.s32.totalorder %s22, 0
      %p43 = por %p41, %p42
      %p44 = scmp.ne.s32.totalorder %s30, %s31
      %p45 = scmp.eq.s32.totalorder %s23, 1
      %p46 = por %p44, %p45
      %p48 = scmp.ne.s32.totalorder %s31, %s47
      %p49 = scmp.eq.s32.totalorder %s23, 0
      %p50 = por %p48, %p49
      %s51 = ssub.s32 %s17, %s24
      %p52 = scmp.eq.s32.totalorder %s51, 0
      %s54 = sadd.s32 %s53, 1
      %s55 = scalar_select %p52, %s53, %s54
      %p58 = pneg %p52
      %p59 = scmp.eq.s32.totalorder %s17, 1
      %p60 = por %p58, %p59
      %p61 = scmp.ne.s32.totalorder %s53, %s56
      %p62 = scmp.eq.s32.totalorder %s17, 0
      %p63 = por %p61, %p62
      %p64 = scmp.ne.s32.totalorder %s53, %s56
      %p65 = scmp.eq.s32.totalorder %s22, 1
      %p66 = por %p64, %p65
      %p67 = scmp.ne.s32.totalorder %s56, %s57
      %p68 = scmp.eq.s32.totalorder %s22, 0
      %p69 = por %p67, %p68
      %p70 = scmp.ne.s32.totalorder %s56, %s57
      %p71 = scmp.eq.s32.totalorder %s23, 1
      %p72 = por %p70, %p71
      %p74 = scmp.ne.s32.totalorder %s57, %s73
      %p75 = scmp.eq.s32.totalorder %s23, 0
      %p76 = por %p74, %p75
      %s78 = sadd.s32 %s77, 1
      %p81 = scmp.eq.s32.totalorder %s17, 1
      %p82 = scmp.ne.s32.totalorder %s77, %s79
      %p83 = scmp.eq.s32.totalorder %s17, 0
      %p84 = por %p82, %p83
      %p85 = scmp.ne.s32.totalorder %s77, %s79
      %p86 = scmp.eq.s32.totalorder %s22, 1
      %p87 = por %p85, %p86
      %p88 = scmp.ne.s32.totalorder %s79, %s80
      %p89 = scmp.eq.s32.totalorder %s22, 0
      %p90 = por %p88, %p89
      %p91 = scmp.ne.s32.totalorder %s79, %s80
      %p92 = scmp.eq.s32.totalorder %s23, 1
      %p93 = por %p91, %p92
      %p95 = scmp.ne.s32.totalorder %s80, %s94
      %p96 = scmp.eq.s32.totalorder %s23, 0
      %p97 = por %p95, %p96
      %s99 = sadd.s32 %s98, 1
      %p102 = scmp.eq.s32.totalorder %s17, 1
      %p103 = scmp.ne.s32.totalorder %s98, %s100
      %p104 = scmp.eq.s32.totalorder %s17, 0
      %p105 = por %p103, %p104
      %p106 = scmp.ne.s32.totalorder %s98, %s100
      %p107 = scmp.eq.s32.totalorder %s22, 1
      %p108 = por %p106, %p107
      %p109 = scmp.ne.s32.totalorder %s100, %s101
      %p110 = scmp.eq.s32.totalorder %s22, 0
      %p111 = por %p109, %p110
      %p112 = scmp.ne.s32.totalorder %s100, %s101
      %p113 = scmp.eq.s32.totalorder %s23, 1
      %p114 = por %p112, %p113
      %p116 = scmp.ne.s32.totalorder %s101, %s115
      %p117 = scmp.eq.s32.totalorder %s23, 0
      %p118 = por %p116, %p117
      %s120 = sadd.s32 %s119, 1
      %p123 = scmp.eq.s32.totalorder %s17, 1
      %p124 = scmp.ne.s32.totalorder %s119, %s121
      %p125 = scmp.eq.s32.totalorder %s17, 0
      %p126 = por %p124, %p125
      %p127 = scmp.ne.s32.totalorder %s119, %s121
      %p128 = scmp.eq.s32.totalorder %s22, 1
      %p129 = por %p127, %p128
      %p130 = scmp.ne.s32.totalorder %s121, %s122
      %p131 = scmp.eq.s32.totalorder %s22, 0
      %p132 = por %p130, %p131
      %p133 = scmp.ne.s32.totalorder %s121, %s122
      %p134 = scmp.eq.s32.totalorder %s23, 1
      %p135 = por %p133, %p134
      %p137 = scmp.ne.s32.totalorder %s122, %s136
      %p138 = scmp.eq.s32.totalorder %s23, 0
      %p139 = por %p137, %p138
      %s141 = sadd.s32 %s140, 1
      %p144 = scmp.eq.s32.totalorder %s17, 1
      %p145 = scmp.ne.s32.totalorder %s140, %s142
      %p146 = scmp.eq.s32.totalorder %s17, 0
      %p147 = por %p145, %p146
      %p148 = scmp.ne.s32.totalorder %s140, %s142
      %p149 = scmp.eq.s32.totalorder %s22, 1
      %p150 = por %p148, %p149
      %p151 = scmp.ne.s32.totalorder %s142, %s143
      %p152 = scmp.eq.s32.totalorder %s22, 0
      %p153 = por %p151, %p152
      %p154 = scmp.ne.s32.totalorder %s142, %s143
      %p155 = scmp.eq.s32.totalorder %s23, 1
      %p156 = por %p154, %p155
      %p158 = scmp.ne.s32.totalorder %s143, %s157
      %p159 = scmp.eq.s32.totalorder %s23, 0
      %p160 = por %p158, %p159
      %s162 = sadd.s32 %s161, 1
      %p165 = scmp.eq.s32.totalorder %s17, 1
      %p166 = scmp.ne.s32.totalorder %s161, %s163
      %p167 = scmp.eq.s32.totalorder %s17, 0
      %p168 = por %p166, %p167
      %p169 = scmp.ne.s32.totalorder %s161, %s163
      %p170 = scmp.eq.s32.totalorder %s22, 1
      %p171 = por %p169, %p170
      %p172 = scmp.ne.s32.totalorder %s163, %s164
      %p173 = scmp.eq.s32.totalorder %s22, 0
      %p174 = por %p172, %p173
      %p175 = scmp.ne.s32.totalorder %s163, %s164
      %p176 = scmp.eq.s32.totalorder %s23, 1
      %p177 = por %p175, %p176
      %p179 = scmp.ne.s32.totalorder %s164, %s178
      %p180 = scmp.eq.s32.totalorder %s23, 0
      %p181 = por %p179, %p180
      %s182 = ssub.s32 %s17, %s24
      %p183 = scmp.eq.s32.totalorder %s182, 0
      %s185 = sadd.s32 %s184, 1
      %s186 = scalar_select %p183, %s184, %s185
      %p189 = pneg %p183
      %p190 = scmp.eq.s32.totalorder %s17, 1
      %p191 = por %p189, %p190
      %p192 = scmp.ne.s32.totalorder %s184, %s187
      %p193 = scmp.eq.s32.totalorder %s17, 0
      %p194 = por %p192, %p193
      %p195 = scmp.ne.s32.totalorder %s184, %s187
      %p196 = scmp.eq.s32.totalorder %s22, 1
      %p197 = por %p195, %p196
      %p198 = scmp.ne.s32.totalorder %s187, %s188
      %p199 = scmp.eq.s32.totalorder %s22, 0
      %p200 = por %p198, %p199
      %p201 = scmp.ne.s32.totalorder %s187, %s188
      %p202 = scmp.eq.s32.totalorder %s23, 1
      %p203 = por %p201, %p202
      %p205 = scmp.ne.s32.totalorder %s188, %s204
      %p206 = scmp.eq.s32.totalorder %s23, 0
      %p207 = por %p205, %p206
      %p208 = scmp.le.s32.totalorder 1, %s17
      %p209 = scmp.lt.s32.totalorder %s17, 3
      %p210 = pnand %p208, %p209
      %p211 = pneg %p210
      // Predicated region
      $region9: #{tpu_custom_call.1} parent=5 // pred_check
        _
      $region10: #{tpu_custom_call.1} parent=5 // pred_check_branch
        %213 = sbr.rel (%p210) target = $region12
      $region11: #{tpu_custom_call.1} parent=5 // pred_region
        %s214 = ssub.s32 %s17, 1
        // Predicated region
        $region13: #{tpu_custom_call.1} parent=11 // pred_check
          %p215 = pneg %p90
        $region14: #{tpu_custom_call.1} parent=11 // pred_check_branch
          %217 = sbr.rel (%p215) target = $region16
        $region15: #{tpu_custom_call.1} parent=11 // pred_region
          _
        $region16: #{tpu_custom_call.1} parent=11 // pred_fallthru
          _
        // Predicated region
        $region17: #{tpu_custom_call.1} parent=11 // pred_check
          %p218 = pneg %p111
        $region18: #{tpu_custom_call.1} parent=11 // pred_check_branch
          %220 = sbr.rel (%p218) target = $region20
        $region19: #{tpu_custom_call.1} parent=11 // pred_region
          _
        $region20: #{tpu_custom_call.1} parent=11 // pred_fallthru
          _
        // Predicated region
        $region21: #{tpu_custom_call.1} parent=11 // pred_check
          %p221 = pneg %p132
        $region22: #{tpu_custom_call.1} parent=11 // pred_check_branch
          %223 = sbr.rel (%p221) target = $region24
        $region23: #{tpu_custom_call.1} parent=11 // pred_region
          %s225 = ssub.s32 512, 512
          %226 = vsyncadd [#allocation3], %s225
          %s227 = sshll.u32 [#allocation2], 4
          %s228 = int_to_ptr.vmem [resolvable:$true] %s227
          %233 = dma.hbm_to_vmem [thread:$0]  %s4, 512, %s228, [#allocation3], 64, 64, 4
        $region24: #{tpu_custom_call.1} parent=11 // pred_fallthru
          _
        // Predicated region
        $region25: #{tpu_custom_call.1} parent=11 // pred_check
          %p234 = pneg %p153
        $region26: #{tpu_custom_call.1} parent=11 // pred_check_branch
          %236 = sbr.rel (%p234) target = $region28
        $region27: #{tpu_custom_call.1} parent=11 // pred_region
          _
        $region28: #{tpu_custom_call.1} parent=11 // pred_fallthru
          _
        // Predicated region
        $region29: #{tpu_custom_call.1} parent=11 // pred_check
          %p237 = pneg %p174
        $region30: #{tpu_custom_call.1} parent=11 // pred_check_branch
          %239 = sbr.rel (%p237) target = $region32
        $region31: #{tpu_custom_call.1} parent=11 // pred_region
          _
        $region32: #{tpu_custom_call.1} parent=11 // pred_fallthru
          _
      $region12: #{tpu_custom_call.1} parent=5 // pred_fallthru
        _
      %p240 = scmp.lt.s32.totalorder %s17, 2
      // Predicated region
      $region33: #{tpu_custom_call.1} parent=5 // pred_check
        %p241 = pneg %p240
      $region34: #{tpu_custom_call.1} parent=5 // pred_check_branch
        %243 = sbr.rel (%p241) target = $region36
      $region35: #{tpu_custom_call.1} parent=5 // pred_region
        // Predicated region
        $region37: #{tpu_custom_call.1} parent=35 // pred_check
          %p244 = pneg %p37
        $region38: #{tpu_custom_call.1} parent=35 // pred_check_branch
          %246 = sbr.rel (%p244) target = $region40
        $region39: #{tpu_custom_call.1} parent=35 // pred_region
          %p247 = scmp.lt.s32.totalorder %s17, 1
          %s248 = scalar_select %p247, %s17, 1
          %s249 = smul.addr %s248, 8
          %s250 = scalar_lea.vmem %s0, %s249
        $region40: #{tpu_custom_call.1} parent=35 // pred_fallthru
          _
        // Predicated region
        $region41: #{tpu_custom_call.1} parent=35 // pred_check
          %p251 = pneg %p63
        $region42: #{tpu_custom_call.1} parent=35 // pred_check_branch
          %253 = sbr.rel (%p251) target = $region44
        $region43: #{tpu_custom_call.1} parent=35 // pred_region
          %s254 = smul.u32 4, %s17
          %p255 = scmp.lt.s32.totalorder %s254, 7
          %s256 = scalar_select %p255, %s254, 7
          %s257 = smul.addr %s256, 8
          %s258 = scalar_lea.vmem %s1, %s257
          %s259 = smul.u32 4, %s17
        $region44: #{tpu_custom_call.1} parent=35 // pred_fallthru
          _
      $region36: #{tpu_custom_call.1} parent=5 // pred_fallthru
        _
      %p260 = scmp.le.s32.totalorder 1, %s17
      %p261 = scmp.lt.s32.totalorder %s17, 3
      %p262 = pnand %p260, %p261
      %p263 = pneg %p262
      // Predicated region
      $region45: #{tpu_custom_call.1} parent=5 // pred_check
        _
      $region46: #{tpu_custom_call.1} parent=5 // pred_check_branch
        %265 = sbr.rel (%p262) target = $region48
      $region47: #{tpu_custom_call.1} parent=5 // pred_region
        %s266 = ssub.s32 %s17, 1
        // Predicated region
        $region49: #{tpu_custom_call.1} parent=47 // pred_check
          %p267 = pneg %p132
        $region50: #{tpu_custom_call.1} parent=47 // pred_check_branch
          %269 = sbr.rel (%p267) target = $region52
        $region51: #{tpu_custom_call.1} parent=47 // pred_region
          %270 = dma.done [#allocation3], 512
        $region52: #{tpu_custom_call.1} parent=47 // pred_fallthru
          _
        %p271 = scmp.lt.s32.totalorder %s22, 1
        %s272 = scalar_select %p271, %s22, 1
        %s273 = smul.addr %s272, 8
        %s274 = scalar_lea.vmem %s0, %s273
        %p275 = pneg %p43
        %p276 = pneg %p40
        %s277 = smul.u32 4, %s22
        %p278 = scmp.lt.s32.totalorder %s277, 7
        %s279 = scalar_select %p278, %s277, 7
        %s280 = smul.addr %s279, 8
        %s281 = scalar_lea.vmem %s1, %s280
        %p282 = pneg %p69
        %p283 = pneg %p66
        %p284 = pneg %p90
        %p285 = pneg %p87
        %p286 = pneg %p111
        %p287 = pneg %p108
        %p288 = pneg %p132
        %p289 = pneg %p129
        %p290 = pneg %p153
        %p291 = pneg %p150
        %p292 = pneg %p174
        %p293 = pneg %p171
        %p294 = pneg %p200
        %p295 = pneg %p197
        %s296 = sand.u32 %s187, 1
        %s297 = scalar_lea.sflag [#allocation4], %s296
        %s298 = sand.u32 %s187, 1
        %s299 = smul.addr %s298, 32
        %s300 = scalar_lea.vmem [#allocation5], %s299
        %p301 = scmp.lt.s32.totalorder %s22, 1
        %s302 = scalar_select %p301, %s22, 1
        %s303 = smul.addr %s302, 8
        %s304 = scalar_lea.vmem %s0, %s303
        %s305 = smul.u32 4, %s22
        %p306 = scmp.lt.s32.totalorder %s305, 7
        %s307 = scalar_select %p306, %s305, 7
        %s308 = smul.addr %s307, 8
        %s309 = scalar_lea.vmem %s1, %s308
        %s310 = smul.u32 4, %s22
        %s311 = smul.u32 4, %s22
        %v314 = vld [vmem:[%s304] sm:$0xff]
        %v315 = vunpack.c.l.s8.bf16 %v314
        %v316 = vunpack.c.h.s8.bf16 %v314
        %vm317 = vcmask 130048
        %v319 = vsel %vm317, %v315, 0
        %v322 = vsel %vm317, %v316, 0
        %324 = vmatprep.subr.bf16.mxu0 0
        %325 = vmatpush1.bf16.msra.mxu0 1065369472
        %326 = vmatprep.subr.bf16.mxu0 0
        %327 = vmatpush1.bf16.msra.mxu0 0
        %328 = vmatprep.subr.bf16.mxu0 0
        %329 = vmatpush1.bf16.msra.mxu0 0
        %330 = vmatprep.subr.bf16.mxu0 0
        %331 = vmatpush1.bf16.msra.mxu0 0
        %332 = vmatprep.subr.bf16.mxu0 0
        %333 = vmatpush1.bf16.msra.mxu0 0
        %334 = vmatprep.subr.bf16.mxu0 0
        %335 = vmatpush1.bf16.msra.mxu0 0
        %336 = vmatprep.subr.bf16.mxu0 0
        %337 = vmatpush1.bf16.msra.mxu0 0
        %338 = vmatprep.subr.bf16.mxu0 0
        %339 = vmatpush1.bf16.msra.mxu0 0
        %340 = vmatprep.subr.bf16.mxu0 0
        %341 = vmatpush1.bf16.msra.mxu0 0
        %342 = vmatprep.subr.bf16.mxu0 0
        %343 = vmatpush1.bf16.msra.mxu0 0
        %344 = vmatprep.subr.bf16.mxu0 0
        %345 = vmatpush1.bf16.msra.mxu0 0
        %346 = vmatprep.subr.bf16.mxu0 0
        %347 = vmatpush1.bf16.msra.mxu0 0
        %348 = vmatprep.subr.bf16.mxu0 0
        %349 = vmatpush1.bf16.msra.mxu0 0
        %350 = vmatprep.subr.bf16.mxu0 0
        %351 = vmatpush1.bf16.msra.mxu0 0
        %352 = vmatprep.subr.bf16.mxu0 0
        %353 = vmatpush1.bf16.msra.mxu0 0
        %354 = vmatprep.subr.bf16.mxu0 0
        %355 = vmatpush1.bf16.msra.mxu0 0
        %356 = vmatprep.mubr.bf16.mxu0 0
        %357 = vmatmul.mubr.bf16.gmra.mrb[0].mxu0 %v319
        %v358 = vpop.f32.mrb[0].mxu0
        %v359 = vadd.f32 1.0, %v358
        %v360 = vpop.f32.mrb[0].mxu0
        %v361 = vpop.f32.mrb[0].mxu0
        %v362 = vadd.f32 1.0, %v361
        %v363 = vpop.f32.mrb[0].mxu0
        %364 = vmatprep.mubr.bf16.mxu0 0
        %365 = vmatmul.mubr.bf16.gmra.mrb[0].mxu0 %v322
        %v366 = vpop.f32.mrb[0].mxu0
        %v367 = vadd.f32 1.0, %v366
        %v368 = vpop.f32.mrb[0].mxu0
        %v369 = vpop.f32.mrb[0].mxu0
        %v370 = vadd.f32 1.0, %v369
        %v371 = vpop.f32.mrb[0].mxu0
        %372 = vdwg.mxu0
        %v373 = vrsqrt.pop %v359
        %v374 = vrsqrt.pop %v362
        %v375 = vrsqrt.pop %v367
        %v376 = vrsqrt.pop %v370
        %v377 = vld [vmem:[%s6] sm:$0x1]
        %v378 = vld [vmem:[%s6 + $0x1] sm:$0x1]
        %v379 = vld [vmem:[%s6 + $0x2] sm:$0x1]
        %v380 = vld [vmem:[%s6 + $0x3] sm:$0x1]
        %v381 = vld [vmem:[%s309] sm:$0xff]
        %v382 = vld [vmem:[%s309 + $0x8] sm:$0xff]
        %v383 = vld [vmem:[%s309 + $0x10] sm:$0xff]
        %v384 = vld [vmem:[%s309 + $0x18] sm:$0xff]
        %v385 = vpack.c.bf16 %v382, %v381
        %v386 = vpack.c.bf16 %v384, %v383
        %v387 = vld [vmem:[%s2] sm:$0xf]
        %vm388 = vcmask 64512
        %v390 = vsel %vm388, %v385, 0
        %v393 = vsel %vm388, %v386, 0
        %vm395 = vcmask 1043456
        %v397 = vsel %vm395, %v387, 0
        %399 = vmatprep.subr.bf16.mxu0 0
        %400 = vmatpush1.bf16.msra.mxu0 %v397
        %401 = vmatprep.subr.bf16.mxu0 0
        %402 = vmatpush1.bf16.msra.mxu0 0
        %403 = vmatprep.subr.bf16.mxu0 0
        %404 = vmatpush1.bf16.msra.mxu0 0
        %405 = vmatprep.subr.bf16.mxu0 0
        %406 = vmatpush1.bf16.msra.mxu0 0
        %407 = vmatprep.subr.bf16.mxu0 0
        %408 = vmatpush1.bf16.msra.mxu0 0
        %409 = vmatprep.subr.bf16.mxu0 0
        %410 = vmatpush1.bf16.msra.mxu0 0
        %411 = vmatprep.subr.bf16.mxu0 0
        %412 = vmatpush1.bf16.msra.mxu0 0
        %413 = vmatprep.subr.bf16.mxu0 0
        %414 = vmatpush1.bf16.msra.mxu0 0
        %415 = vmatprep.subr.bf16.mxu0 0
        %416 = vmatpush1.bf16.msra.mxu0 0
        %417 = vmatprep.subr.bf16.mxu0 0
        %418 = vmatpush1.bf16.msra.mxu0 0
        %419 = vmatprep.subr.bf16.mxu0 0
        %420 = vmatpush1.bf16.msra.mxu0 0
        %421 = vmatprep.subr.bf16.mxu0 0
        %422 = vmatpush1.bf16.msra.mxu0 0
        %423 = vmatprep.subr.bf16.mxu0 0
        %424 = vmatpush1.bf16.msra.mxu0 0
        %425 = vmatprep.subr.bf16.mxu0 0
        %426 = vmatpush1.bf16.msra.mxu0 0
        %427 = vmatprep.subr.bf16.mxu0 0
        %428 = vmatpush1.bf16.msra.mxu0 0
        %429 = vmatprep.subr.bf16.mxu0 0
        %430 = vmatpush1.bf16.msra.mxu0 0
        %431 = vmatprep.mubr.bf16.mxu0 0
        %432 = vmatmul.mubr.bf16.gmra.mrb[0].mxu0 %v390
        %v433 = vpop.f32.mrb[0].mxu0
        %v434 = vadd.f32 0.0, %v433
        %v435 = vpop.f32.mrb[0].mxu0
        %v436 = vpop.f32.mrb[0].mxu0
        %v437 = vadd.f32 0.0, %v436
        %v438 = vpop.f32.mrb[0].mxu0
        %439 = vmatprep.mubr.bf16.mxu0 0
        %440 = vmatmul.mubr.bf16.gmra.mrb[0].mxu0 %v393
        %v441 = vpop.f32.mrb[0].mxu0
        %v442 = vadd.f32 0.0, %v441
        %v443 = vpop.f32.mrb[0].mxu0
        %v444 = vpop.f32.mrb[0].mxu0
        %v445 = vadd.f32 0.0, %v444
        %v446 = vpop.f32.mrb[0].mxu0
        %447 = vdwg.mxu0
        %449 = vset.pattern.permute.xlu0 0
        %450 = vperm.xlu0 %449, %v373
        %v451 = vpop.permute.xlu0 %450
        %454 = vset.pattern.permute.xlu0 0
        %455 = vperm.xlu0 %454, %v374
        %v456 = vpop.permute.xlu0 %455
        %459 = vset.pattern.permute.xlu0 0
        %460 = vperm.xlu0 %459, %v375
        %v461 = vpop.permute.xlu0 %460
        %464 = vset.pattern.permute.xlu0 0
        %465 = vperm.xlu0 %464, %v376
        %v466 = vpop.permute.xlu0 %465
        %v468 = vmul.f32 %v451, %v434
        %v469 = vmul.f32 %v456, %v437
        %v470 = vmul.f32 %v461, %v442
        %v471 = vmul.f32 %v466, %v445
        %v472 = vpack.c.bf16 %v469, %v468
        %v473 = vpack.c.bf16 %v471, %v470
        %474 = vmatprep.subr.bf16.mxu0 0
        %475 = vmatpush1.bf16.msra.mxu0 %v472
        %476 = vmatprep.subr.bf16.mxu0 0
        %477 = vmatpush1.bf16.msra.mxu0 0
        %478 = vmatprep.subr.bf16.mxu0 0
        %479 = vmatpush1.bf16.msra.mxu0 0
        %480 = vmatprep.subr.bf16.mxu0 0
        %481 = vmatpush1.bf16.msra.mxu0 0
        %482 = vmatprep.subr.bf16.mxu0 0
        %483 = vmatpush1.bf16.msra.mxu0 0
        %484 = vmatprep.subr.bf16.mxu0 0
        %485 = vmatpush1.bf16.msra.mxu0 0
        %486 = vmatprep.subr.bf16.mxu0 0
        %487 = vmatpush1.bf16.msra.mxu0 0
        %488 = vmatprep.subr.bf16.mxu0 0
        %489 = vmatpush1.bf16.msra.mxu0 0
        %490 = vmatprep.subr.bf16.mxu0 0
        %491 = vmatpush1.bf16.msra.mxu0 0
        %492 = vmatprep.subr.bf16.mxu0 0
        %493 = vmatpush1.bf16.msra.mxu0 0
        %494 = vmatprep.subr.bf16.mxu0 0
        %495 = vmatpush1.bf16.msra.mxu0 0
        %496 = vmatprep.subr.bf16.mxu0 0
        %497 = vmatpush1.bf16.msra.mxu0 0
        %498 = vmatprep.subr.bf16.mxu0 0
        %499 = vmatpush1.bf16.msra.mxu0 0
        %500 = vmatprep.subr.bf16.mxu0 0
        %501 = vmatpush1.bf16.msra.mxu0 0
        %502 = vmatprep.subr.bf16.mxu0 0
        %503 = vmatpush1.bf16.msra.mxu0 0
        %504 = vmatprep.subr.bf16.mxu0 0
        %505 = vmatpush1.bf16.msra.mxu0 0
        %506 = vmatprep.mubr.bf16.mxu0 0
        %507 = vmatmul.mubr.bf16.gmra.mrb[0].mxu0 %v319
        %v508 = vpop.f32.mrb[0].mxu0
        %v509 = vadd.f32 0.0, %v508
        %v510 = vpop.f32.mrb[0].mxu0
        %v511 = vpop.f32.mrb[0].mxu0
        %v512 = vadd.f32 0.0, %v511
        %v513 = vpop.f32.mrb[0].mxu0
        %514 = vdwg.mxu0
        %515 = vmatprep.subr.bf16.mxu0 0
        %516 = vmatpush1.bf16.msra.mxu0 %v473
        %517 = vmatprep.subr.bf16.mxu0 0
        %518 = vmatpush1.bf16.msra.mxu0 0
        %519 = vmatprep.subr.bf16.mxu0 0
        %520 = vmatpush1.bf16.msra.mxu0 0
        %521 = vmatprep.subr.bf16.mxu0 0
        %522 = vmatpush1.bf16.msra.mxu0 0
        %523 = vmatprep.subr.bf16.mxu0 0
        %524 = vmatpush1.bf16.msra.mxu0 0
        %525 = vmatprep.subr.bf16.mxu0 0
        %526 = vmatpush1.bf16.msra.mxu0 0
        %527 = vmatprep.subr.bf16.mxu0 0
        %528 = vmatpush1.bf16.msra.mxu0 0
        %529 = vmatprep.subr.bf16.mxu0 0
        %530 = vmatpush1.bf16.msra.mxu0 0
        %531 = vmatprep.subr.bf16.mxu0 0
        %532 = vmatpush1.bf16.msra.mxu0 0
        %533 = vmatprep.subr.bf16.mxu0 0
        %534 = vmatpush1.bf16.msra.mxu0 0
        %535 = vmatprep.subr.bf16.mxu0 0
        %536 = vmatpush1.bf16.msra.mxu0 0
        %537 = vmatprep.subr.bf16.mxu0 0
        %538 = vmatpush1.bf16.msra.mxu0 0
        %539 = vmatprep.subr.bf16.mxu0 0
        %540 = vmatpush1.bf16.msra.mxu0 0
        %541 = vmatprep.subr.bf16.mxu0 0
        %542 = vmatpush1.bf16.msra.mxu0 0
        %543 = vmatprep.subr.bf16.mxu0 0
        %544 = vmatpush1.bf16.msra.mxu0 0
        %545 = vmatprep.subr.bf16.mxu0 0
        %546 = vmatpush1.bf16.msra.mxu0 0
        %547 = vmatprep.mubr.bf16.mxu0 0
        %548 = vmatmul.mubr.bf16.gmra.mrb[0].mxu0 %v322
        %v549 = vpop.f32.mrb[0].mxu0
        %v550 = vadd.f32 0.0, %v549
        %v551 = vpop.f32.mrb[0].mxu0
        %v552 = vpop.f32.mrb[0].mxu0
        %v553 = vadd.f32 0.0, %v552
        %v554 = vpop.f32.mrb[0].mxu0
        %555 = vdwg.mxu0
        %v556 = vadd.f32 %v509, %v468
        %v557 = vadd.f32 %v512, %v469
        %v558 = vadd.f32 %v550, %v470
        %v559 = vadd.f32 %v553, %v471
        %v560 = vmul.f32 %v451, %v556
        %v561 = vmul.f32 %v456, %v557
        %v562 = vmul.f32 %v461, %v558
        %v563 = vmul.f32 %v466, %v559
        %v564 = vlaneseq
        %v565 = vshrl.u32 %v564, 7
        %v566 = vsub.s32 0, %v565
        %v567 = vrot.slane %v377, %v566
        %v568 = vadd.f32 %v560, %v567
        %v569 = vadd.f32 %v561, %v567
        %v570 = vadd.f32 %v562, %v567
        %v571 = vadd.f32 %v563, %v567
        %vm572 = vcmp.gt.f32.partialorder %v568, 0.0
        %vm573 = vcmp.gt.f32.partialorder %v569, 0.0
        %vm574 = vcmp.gt.f32.partialorder %v570, 0.0
        %vm575 = vcmp.gt.f32.partialorder %v571, 0.0
        %v576 = vmin.f32 %v568, 0.0
        %v577 = vmin.f32 %v569, 0.0
        %v578 = vmin.f32 %v570, 0.0
        %v579 = vmin.f32 %v571, 0.0
        %v580 = vmul.f32 %v576, 1.442695
        %v581 = vpow.pop %v580
        %v582 = vmul.f32 %v577, 1.442695
        %v583 = vpow.pop %v582
        %v584 = vmul.f32 %v578, 1.442695
        %v585 = vpow.pop %v584
        %v586 = vmul.f32 %v579, 1.442695
        %v587 = vpow.pop %v586
        %v588 = vsub.f32 %v581, 1.0
        %v589 = vsub.f32 %v583, 1.0
        %v590 = vsub.f32 %v585, 1.0
        %v591 = vsub.f32 %v587, 1.0
        %v592 = vsel %vm572, %v568, %v588
        %v593 = vsel %vm573, %v569, %v589
        %v594 = vsel %vm574, %v570, %v590
        %v595 = vsel %vm575, %v571, %v591
        %v596 = vpack.c.bf16 %v593, %v592
        %v597 = vpack.c.bf16 %v595, %v594
        %v598 = vld [vmem:[%s3] sm:$0xf]
        %v599 = vld [vmem:[%s3 + $0x4] sm:$0xf]
        %v600 = vld [vmem:[%s3 + $0x8] sm:$0xf]
        %v601 = vld [vmem:[%s3 + $0xc] sm:$0xf]
        %v602 = vld [vmem:[%s3 + $0x10] sm:$0xf]
        %v603 = vld [vmem:[%s3 + $0x14] sm:$0xf]
        %v604 = vld [vmem:[%s3 + $0x18] sm:$0xf]
        %v605 = vld [vmem:[%s3 + $0x1c] sm:$0xf]
        %v614 = vunpack.c.l.b16 %v598
        %v615 = vunpack.c.l.b16 %v599
        %v616 = vunpack.c.l.b16 %v600
        %v617 = vunpack.c.l.b16 %v601
        %v618 = vunpack.c.l.b16 %v602
        %v619 = vunpack.c.l.b16 %v603
        %v620 = vunpack.c.l.b16 %v604
        %v621 = vunpack.c.l.b16 %v605
        %v622 = vpack.c.b16 %v615, %v614
        %v623 = vpack.c.b16 %v617, %v616
        %v624 = vpack.c.b16 %v619, %v618
        %v625 = vpack.c.b16 %v621, %v620
        %vm630 = vcmask 523264
        %v632 = vsel %vm630, %v596, 0
        %v635 = vsel %vm630, %v597, 0
        %637 = vmatprep.subr.bf16.mxu0 0
        %638 = vmatpush1.bf16.msra.mxu0 %v622
        %639 = vmatprep.subr.bf16.mxu0 0
        %640 = vmatpush1.bf16.msra.mxu0 %v623
        %641 = vmatprep.subr.bf16.mxu0 0
        %642 = vmatpush1.bf16.msra.mxu0 %v624
        %643 = vmatprep.subr.bf16.mxu0 0
        %644 = vmatpush1.bf16.msra.mxu0 %v625
        %645 = vmatprep.subr.bf16.mxu0 0
        %646 = vmatpush1.bf16.msra.mxu0 0
        %647 = vmatprep.subr.bf16.mxu0 0
        %648 = vmatpush1.bf16.msra.mxu0 0
        %649 = vmatprep.subr.bf16.mxu0 0
        %650 = vmatpush1.bf16.msra.mxu0 0
        %651 = vmatprep.subr.bf16.mxu0 0
        %652 = vmatpush1.bf16.msra.mxu0 0
        %653 = vmatprep.subr.bf16.mxu0 0
        %654 = vmatpush1.bf16.msra.mxu0 0
        %655 = vmatprep.subr.bf16.mxu0 0
        %656 = vmatpush1.bf16.msra.mxu0 0
        %657 = vmatprep.subr.bf16.mxu0 0
        %658 = vmatpush1.bf16.msra.mxu0 0
        %659 = vmatprep.subr.bf16.mxu0 0
        %660 = vmatpush1.bf16.msra.mxu0 0
        %661 = vmatprep.subr.bf16.mxu0 0
        %662 = vmatpush1.bf16.msra.mxu0 0
        %663 = vmatprep.subr.bf16.mxu0 0
        %664 = vmatpush1.bf16.msra.mxu0 0
        %665 = vmatprep.subr.bf16.mxu0 0
        %666 = vmatpush1.bf16.msra.mxu0 0
        %667 = vmatprep.subr.bf16.mxu0 0
        %668 = vmatpush1.bf16.msra.mxu0 0
        %669 = vmatprep.mubr.bf16.mxu0 0
        %670 = vmatmul.mubr.bf16.gmra.mrb[0].mxu0 %v632
        %v671 = vpop.f32.mrb[0].mxu0
        %v672 = vadd.f32 0.0, %v671
        %v673 = vpop.f32.mrb[0].mxu0
        %v674 = vpop.f32.mrb[0].mxu0
        %v675 = vadd.f32 0.0, %v674
        %v676 = vpop.f32.mrb[0].mxu0
        %677 = vmatprep.mubr.bf16.mxu0 0
        %678 = vmatmul.mubr.bf16.gmra.mrb[0].mxu0 %v635
        %v679 = vpop.f32.mrb[0].mxu0
        %v680 = vadd.f32 0.0, %v679
        %v681 = vpop.f32.mrb[0].mxu0
        %v682 = vpop.f32.mrb[0].mxu0
        %v683 = vadd.f32 0.0, %v682
        %v684 = vpop.f32.mrb[0].mxu0
        %685 = vdwg.mxu0
        %v686 = vmul.f32 %v451, %v672
        %v687 = vmul.f32 %v456, %v675
        %v688 = vmul.f32 %v461, %v680
        %v689 = vmul.f32 %v466, %v683
        %v690 = vpack.c.bf16 %v687, %v686
        %v691 = vpack.c.bf16 %v689, %v688
        %692 = vmatprep.subr.bf16.mxu0 0
        %693 = vmatpush1.bf16.msra.mxu0 %v690
        %694 = vmatprep.subr.bf16.mxu0 0
        %695 = vmatpush1.bf16.msra.mxu0 0
        %696 = vmatprep.subr.bf16.mxu0 0
        %697 = vmatpush1.bf16.msra.mxu0 0
        %698 = vmatprep.subr.bf16.mxu0 0
        %699 = vmatpush1.bf16.msra.mxu0 0
        %700 = vmatprep.subr.bf16.mxu0 0
        %701 = vmatpush1.bf16.msra.mxu0 0
        %702 = vmatprep.subr.bf16.mxu0 0
        %703 = vmatpush1.bf16.msra.mxu0 0
        %704 = vmatprep.subr.bf16.mxu0 0
        %705 = vmatpush1.bf16.msra.mxu0 0
        %706 = vmatprep.subr.bf16.mxu0 0
        %707 = vmatpush1.bf16.msra.mxu0 0
        %708 = vmatprep.subr.bf16.mxu0 0
        %709 = vmatpush1.bf16.msra.mxu0 0
        %710 = vmatprep.subr.bf16.mxu0 0
        %711 = vmatpush1.bf16.msra.mxu0 0
        %712 = vmatprep.subr.bf16.mxu0 0
        %713 = vmatpush1.bf16.msra.mxu0 0
        %714 = vmatprep.subr.bf16.mxu0 0
        %715 = vmatpush1.bf16.msra.mxu0 0
        %716 = vmatprep.subr.bf16.mxu0 0
        %717 = vmatpush1.bf16.msra.mxu0 0
        %718 = vmatprep.subr.bf16.mxu0 0
        %719 = vmatpush1.bf16.msra.mxu0 0
        %720 = vmatprep.subr.bf16.mxu0 0
        %721 = vmatpush1.bf16.msra.mxu0 0
        %722 = vmatprep.subr.bf16.mxu0 0
        %723 = vmatpush1.bf16.msra.mxu0 0
        %724 = vmatprep.mubr.bf16.mxu0 0
        %725 = vmatmul.mubr.bf16.gmra.mrb[0].mxu0 %v319
        %v726 = vpop.f32.mrb[0].mxu0
        %v727 = vadd.f32 0.0, %v726
        %v728 = vpop.f32.mrb[0].mxu0
        %v729 = vpop.f32.mrb[0].mxu0
        %v730 = vadd.f32 0.0, %v729
        %v731 = vpop.f32.mrb[0].mxu0
        %732 = vdwg.mxu0
        %733 = vmatprep.subr.bf16.mxu0 0
        %734 = vmatpush1.bf16.msra.mxu0 %v691
        %735 = vmatprep.subr.bf16.mxu0 0
        %736 = vmatpush1.bf16.msra.mxu0 0
        %737 = vmatprep.subr.bf16.mxu0 0
        %738 = vmatpush1.bf16.msra.mxu0 0
        %739 = vmatprep.subr.bf16.mxu0 0
        %740 = vmatpush1.bf16.msra.mxu0 0
        %741 = vmatprep.subr.bf16.mxu0 0
        %742 = vmatpush1.bf16.msra.mxu0 0
        %743 = vmatprep.subr.bf16.mxu0 0
        %744 = vmatpush1.bf16.msra.mxu0 0
        %745 = vmatprep.subr.bf16.mxu0 0
        %746 = vmatpush1.bf16.msra.mxu0 0
        %747 = vmatprep.subr.bf16.mxu0 0
        %748 = vmatpush1.bf16.msra.mxu0 0
        %749 = vmatprep.subr.bf16.mxu0 0
        %750 = vmatpush1.bf16.msra.mxu0 0
        %751 = vmatprep.subr.bf16.mxu0 0
        %752 = vmatpush1.bf16.msra.mxu0 0
        %753 = vmatprep.subr.bf16.mxu0 0
        %754 = vmatpush1.bf16.msra.mxu0 0
        %755 = vmatprep.subr.bf16.mxu0 0
        %756 = vmatpush1.bf16.msra.mxu0 0
        %757 = vmatprep.subr.bf16.mxu0 0
        %758 = vmatpush1.bf16.msra.mxu0 0
        %759 = vmatprep.subr.bf16.mxu0 0
        %760 = vmatpush1.bf16.msra.mxu0 0
        %761 = vmatprep.subr.bf16.mxu0 0
        %762 = vmatpush1.bf16.msra.mxu0 0
        %763 = vmatprep.subr.bf16.mxu0 0
        %764 = vmatpush1.bf16.msra.mxu0 0
        %765 = vmatprep.mubr.bf16.mxu0 0
        %766 = vmatmul.mubr.bf16.gmra.mrb[0].mxu0 %v322
        %v767 = vpop.f32.mrb[0].mxu0
        %v768 = vadd.f32 0.0, %v767
        %v769 = vpop.f32.mrb[0].mxu0
        %v770 = vpop.f32.mrb[0].mxu0
        %v771 = vadd.f32 0.0, %v770
        %v772 = vpop.f32.mrb[0].mxu0
        %773 = vdwg.mxu0
        %v774 = vadd.f32 %v727, %v686
        %v775 = vadd.f32 %v730, %v687
        %v776 = vadd.f32 %v768, %v688
        %v777 = vadd.f32 %v771, %v689
        %v778 = vmul.f32 %v451, %v774
        %v779 = vmul.f32 %v456, %v775
        %v780 = vmul.f32 %v461, %v776
        %v781 = vmul.f32 %v466, %v777
        %v782 = vlaneseq
        %v783 = vshrl.u32 %v782, 7
        %v784 = vsub.s32 0, %v783
        %v785 = vrot.slane %v378, %v784
        %v786 = vadd.f32 %v778, %v785
        %v787 = vadd.f32 %v779, %v785
        %v788 = vadd.f32 %v780, %v785
        %v789 = vadd.f32 %v781, %v785
        %vm790 = vcmp.gt.f32.partialorder %v786, 0.0
        %vm791 = vcmp.gt.f32.partialorder %v787, 0.0
        %vm792 = vcmp.gt.f32.partialorder %v788, 0.0
        %vm793 = vcmp.gt.f32.partialorder %v789, 0.0
        %v794 = vmin.f32 %v786, 0.0
        %v795 = vmin.f32 %v787, 0.0
        %v796 = vmin.f32 %v788, 0.0
        %v797 = vmin.f32 %v789, 0.0
        %v798 = vmul.f32 %v794, 1.442695
        %v799 = vpow.pop %v798
        %v800 = vmul.f32 %v795, 1.442695
        %v801 = vpow.pop %v800
        %v802 = vmul.f32 %v796, 1.442695
        %v803 = vpow.pop %v802
        %v804 = vmul.f32 %v797, 1.442695
        %v805 = vpow.pop %v804
        %v806 = vsub.f32 %v799, 1.0
        %v807 = vsub.f32 %v801, 1.0
        %v808 = vsub.f32 %v803, 1.0
        %v809 = vsub.f32 %v805, 1.0
        %v810 = vsel %vm790, %v786, %v806
        %v811 = vsel %vm791, %v787, %v807
        %v812 = vsel %vm792, %v788, %v808
        %v813 = vsel %vm793, %v789, %v809
        %v814 = vpack.c.bf16 %v811, %v810
        %v815 = vpack.c.bf16 %v813, %v812
        %v816 = vld [vmem:[#allocation2] sm:$0xf]
        %v817 = vld [vmem:[#allocation2 + $0x4] sm:$0xf]
        %v818 = vld [vmem:[#allocation2 + $0x8] sm:$0xf]
        %v819 = vld [vmem:[#allocation2 + $0xc] sm:$0xf]
        %v820 = vld [vmem:[#allocation2 + $0x10] sm:$0xf]
        %v821 = vld [vmem:[#allocation2 + $0x14] sm:$0xf]
        %v822 = vld [vmem:[#allocation2 + $0x18] sm:$0xf]
        %v823 = vld [vmem:[#allocation2 + $0x1c] sm:$0xf]
        %v824 = vlaneseq
        %v825 = vshrl.u32 %v824, 7
        %v826 = vsub.s32 0, %v825
        %v827 = vrot.slane %v379, %v826
        %v836 = vunpack.c.l.b16 %v816
        %v837 = vunpack.c.l.b16 %v817
        %v838 = vunpack.c.l.b16 %v818
        %v839 = vunpack.c.l.b16 %v819
        %v840 = vunpack.c.l.b16 %v820
        %v841 = vunpack.c.l.b16 %v821
        %v842 = vunpack.c.l.b16 %v822
        %v843 = vunpack.c.l.b16 %v823
        %v844 = vpack.c.b16 %v837, %v836
        %v845 = vpack.c.b16 %v839, %v838
        %v846 = vpack.c.b16 %v841, %v840
        %v847 = vpack.c.b16 %v843, %v842
        %v853 = vsel %vm630, %v814, 0
        %v856 = vsel %vm630, %v815, 0
        %858 = vmatprep.subr.bf16.mxu0 0
        %859 = vmatpush1.bf16.msra.mxu0 %v844
        %860 = vmatprep.subr.bf16.mxu0 0
        %861 = vmatpush1.bf16.msra.mxu0 %v845
        %862 = vmatprep.subr.bf16.mxu0 0
        %863 = vmatpush1.bf16.msra.mxu0 %v846
        %864 = vmatprep.subr.bf16.mxu0 0
        %865 = vmatpush1.bf16.msra.mxu0 %v847
        %866 = vmatprep.subr.bf16.mxu0 0
        %867 = vmatpush1.bf16.msra.mxu0 0
        %868 = vmatprep.subr.bf16.mxu0 0
        %869 = vmatpush1.bf16.msra.mxu0 0
        %870 = vmatprep.subr.bf16.mxu0 0
        %871 = vmatpush1.bf16.msra.mxu0 0
        %872 = vmatprep.subr.bf16.mxu0 0
        %873 = vmatpush1.bf16.msra.mxu0 0
        %874 = vmatprep.subr.bf16.mxu0 0
        %875 = vmatpush1.bf16.msra.mxu0 0
        %876 = vmatprep.subr.bf16.mxu0 0
        %877 = vmatpush1.bf16.msra.mxu0 0
        %878 = vmatprep.subr.bf16.mxu0 0
        %879 = vmatpush1.bf16.msra.mxu0 0
        %880 = vmatprep.subr.bf16.mxu0 0
        %881 = vmatpush1.bf16.msra.mxu0 0
        %882 = vmatprep.subr.bf16.mxu0 0
        %883 = vmatpush1.bf16.msra.mxu0 0
        %884 = vmatprep.subr.bf16.mxu0 0
        %885 = vmatpush1.bf16.msra.mxu0 0
        %886 = vmatprep.subr.bf16.mxu0 0
        %887 = vmatpush1.bf16.msra.mxu0 0
        %888 = vmatprep.subr.bf16.mxu0 0
        %889 = vmatpush1.bf16.msra.mxu0 0
        %890 = vmatprep.mubr.bf16.mxu0 0
        %891 = vmatmul.mubr.bf16.gmra.mrb[0].mxu0 %v853
        %v892 = vpop.f32.mrb[0].mxu0
        %v893 = vadd.f32 %v827, %v892
        %v894 = vpop.f32.mrb[0].mxu0
        %v895 = vpop.f32.mrb[0].mxu0
        %v896 = vadd.f32 %v827, %v895
        %v897 = vpop.f32.mrb[0].mxu0
        %898 = vmatprep.mubr.bf16.mxu0 0
        %899 = vmatmul.mubr.bf16.gmra.mrb[0].mxu0 %v856
        %v900 = vpop.f32.mrb[0].mxu0
        %v901 = vadd.f32 %v827, %v900
        %v902 = vpop.f32.mrb[0].mxu0
        %v903 = vpop.f32.mrb[0].mxu0
        %v904 = vadd.f32 %v827, %v903
        %v905 = vpop.f32.mrb[0].mxu0
        %906 = vdwg.mxu0
        %vm907 = vcmp.gt.f32.partialorder %v893, 0.0
        %vm908 = vcmp.gt.f32.partialorder %v896, 0.0
        %vm909 = vcmp.gt.f32.partialorder %v901, 0.0
        %vm910 = vcmp.gt.f32.partialorder %v904, 0.0
        %v911 = vmin.f32 %v893, 0.0
        %v912 = vmin.f32 %v896, 0.0
        %v913 = vmin.f32 %v901, 0.0
        %v914 = vmin.f32 %v904, 0.0
        %v915 = vmul.f32 %v911, 1.442695
        %v916 = vpow.pop %v915
        %v917 = vmul.f32 %v912, 1.442695
        %v918 = vpow.pop %v917
        %v919 = vmul.f32 %v913, 1.442695
        %v920 = vpow.pop %v919
        %v921 = vmul.f32 %v914, 1.442695
        %v922 = vpow.pop %v921
        %v923 = vsub.f32 %v916, 1.0
        %v924 = vsub.f32 %v918, 1.0
        %v925 = vsub.f32 %v920, 1.0
        %v926 = vsub.f32 %v922, 1.0
        %v927 = vsel %vm907, %v893, %v923
        %v928 = vsel %vm908, %v896, %v924
        %v929 = vsel %vm909, %v901, %v925
        %v930 = vsel %vm910, %v904, %v926
        %v931 = vpack.c.bf16 %v928, %v927
        %v932 = vpack.c.bf16 %v930, %v929
        %v933 = vld [vmem:[%s5] sm:$0xf]
        %v934 = vld [vmem:[%s5 + $0x4] sm:$0xf]
        %v935 = vld [vmem:[%s5 + $0x8] sm:$0xf]
        %v936 = vld [vmem:[%s5 + $0xc] sm:$0xf]
        %v937 = vld [vmem:[%s5 + $0x10] sm:$0xf]
        %v938 = vld [vmem:[%s5 + $0x14] sm:$0xf]
        %v939 = vld [vmem:[%s5 + $0x18] sm:$0xf]
        %v940 = vld [vmem:[%s5 + $0x1c] sm:$0xf]
        %v941 = vld [vmem:[%s5 + $0x20] sm:$0xf]
        %v942 = vld [vmem:[%s5 + $0x24] sm:$0xf]
        %v943 = vld [vmem:[%s5 + $0x28] sm:$0xf]
        %v944 = vld [vmem:[%s5 + $0x2c] sm:$0xf]
        %v945 = vld [vmem:[%s5 + $0x30] sm:$0xf]
        %v946 = vld [vmem:[%s5 + $0x34] sm:$0xf]
        %v947 = vld [vmem:[%s5 + $0x38] sm:$0xf]
        %v948 = vld [vmem:[%s5 + $0x3c] sm:$0xf]
        %v949 = vlaneseq
        %v950 = vshrl.u32 %v949, 7
        %v951 = vsub.s32 0, %v950
        %v952 = vrot.slane %v380, %v951
        %v969 = vunpack.c.l.b16 %v933
        %v970 = vunpack.c.l.b16 %v934
        %v971 = vunpack.c.l.b16 %v935
        %v972 = vunpack.c.l.b16 %v936
        %v973 = vunpack.c.l.b16 %v937
        %v974 = vunpack.c.l.b16 %v938
        %v975 = vunpack.c.l.b16 %v939
        %v976 = vunpack.c.l.b16 %v940
        %v977 = vunpack.c.l.b16 %v941
        %v978 = vunpack.c.l.b16 %v942
        %v979 = vunpack.c.l.b16 %v943
        %v980 = vunpack.c.l.b16 %v944
        %v981 = vunpack.c.l.b16 %v945
        %v982 = vunpack.c.l.b16 %v946
        %v983 = vunpack.c.l.b16 %v947
        %v984 = vunpack.c.l.b16 %v948
        %v985 = vpack.c.b16 %v970, %v969
        %v986 = vpack.c.b16 %v972, %v971
        %v987 = vpack.c.b16 %v974, %v973
        %v988 = vpack.c.b16 %v976, %v975
        %v989 = vpack.c.b16 %v978, %v977
        %v990 = vpack.c.b16 %v980, %v979
        %v991 = vpack.c.b16 %v982, %v981
        %v992 = vpack.c.b16 %v984, %v983
        %1001 = vmatprep.subr.bf16.mxu0 0
        %1002 = vmatpush1.bf16.msra.mxu0 %v985
        %1003 = vmatprep.subr.bf16.mxu0 0
        %1004 = vmatpush1.bf16.msra.mxu0 %v986
        %1005 = vmatprep.subr.bf16.mxu0 0
        %1006 = vmatpush1.bf16.msra.mxu0 %v987
        %1007 = vmatprep.subr.bf16.mxu0 0
        %1008 = vmatpush1.bf16.msra.mxu0 %v988
        %1009 = vmatprep.subr.bf16.mxu0 0
        %1010 = vmatpush1.bf16.msra.mxu0 %v989
        %1011 = vmatprep.subr.bf16.mxu0 0
        %1012 = vmatpush1.bf16.msra.mxu0 %v990
        %1013 = vmatprep.subr.bf16.mxu0 0
        %1014 = vmatpush1.bf16.msra.mxu0 %v991
        %1015 = vmatprep.subr.bf16.mxu0 0
        %1016 = vmatpush1.bf16.msra.mxu0 %v992
        %1017 = vmatprep.subr.bf16.mxu0 0
        %1018 = vmatpush1.bf16.msra.mxu0 0
        %1019 = vmatprep.subr.bf16.mxu0 0
        %1020 = vmatpush1.bf16.msra.mxu0 0
        %1021 = vmatprep.subr.bf16.mxu0 0
        %1022 = vmatpush1.bf16.msra.mxu0 0
        %1023 = vmatprep.subr.bf16.mxu0 0
        %1024 = vmatpush1.bf16.msra.mxu0 0
        %1025 = vmatprep.subr.bf16.mxu0 0
        %1026 = vmatpush1.bf16.msra.mxu0 0
        %1027 = vmatprep.subr.bf16.mxu0 0
        %1028 = vmatpush1.bf16.msra.mxu0 0
        %1029 = vmatprep.subr.bf16.mxu0 0
        %1030 = vmatpush1.bf16.msra.mxu0 0
        %1031 = vmatprep.subr.bf16.mxu0 0
        %1032 = vmatpush1.bf16.msra.mxu0 0
        %1033 = vmatprep.mubr.bf16.mxu0 0
        %1034 = vmatmul.mubr.bf16.gmra.mrb[0].mxu0 %v931
        %v1035 = vpop.f32.mrb[0].mxu0
        %v1036 = vadd.f32 %v952, %v1035
        %v1037 = vpop.f32.mrb[0].mxu0
        %v1038 = vpop.f32.mrb[0].mxu0
        %v1039 = vadd.f32 %v952, %v1038
        %v1040 = vpop.f32.mrb[0].mxu0
        %1041 = vmatprep.mubr.bf16.mxu0 0
        %1042 = vmatmul.mubr.bf16.gmra.mrb[0].mxu0 %v932
        %v1043 = vpop.f32.mrb[0].mxu0
        %v1044 = vadd.f32 %v952, %v1043
        %v1045 = vpop.f32.mrb[0].mxu0
        %v1046 = vpop.f32.mrb[0].mxu0
        %v1047 = vadd.f32 %v952, %v1046
        %v1048 = vpop.f32.mrb[0].mxu0
        %1049 = vdwg.mxu0
        %1050 = vmax.xlane.f32.xlu0 %v1036
        %v1051 = vpop.xlane.xlu0 %1050
        %1052 = vmax.xlane.f32.xlu0 %v1039
        %v1053 = vpop.xlane.xlu0 %1052
        %1054 = vmax.xlane.f32.xlu0 %v1044
        %v1055 = vpop.xlane.xlu0 %1054
        %1056 = vmax.xlane.f32.xlu0 %v1047
        %v1057 = vpop.xlane.xlu0 %1056
        %v1058 = vsub.f32 %v1036, %v1051
        %v1059 = vsub.f32 %v1039, %v1053
        %v1060 = vsub.f32 %v1044, %v1055
        %v1061 = vsub.f32 %v1047, %v1057
        %v1062 = vmul.f32 %v1058, 1.442695
        %v1063 = vpow.pop %v1062
        %v1064 = vmul.f32 %v1059, 1.442695
        %v1065 = vpow.pop %v1064
        %v1066 = vmul.f32 %v1060, 1.442695
        %v1067 = vpow.pop %v1066
        %v1068 = vmul.f32 %v1061, 1.442695
        %v1069 = vpow.pop %v1068
        %1070 = vadd.xlane.f32.xlu0 %v1063
        %v1071 = vpop.xlane.xlu0 %1070
        %1072 = vadd.xlane.f32.xlu0 %v1065
        %v1073 = vpop.xlane.xlu0 %1072
        %1074 = vadd.xlane.f32.xlu0 %v1067
        %v1075 = vpop.xlane.xlu0 %1074
        %1076 = vadd.xlane.f32.xlu0 %v1069
        %v1077 = vpop.xlane.xlu0 %1076
        %v1078 = vrcp.pop %v1071
        %v1079 = vmul.f32 %v1063, %v1078
        %v1080 = vrcp.pop %v1073
        %v1081 = vmul.f32 %v1065, %v1080
        %v1082 = vrcp.pop %v1075
        %v1083 = vmul.f32 %v1067, %v1082
        %v1084 = vrcp.pop %v1077
        %v1085 = vmul.f32 %v1069, %v1084
        %1086 = vst [vmem:[%s300] sm:$0xff] %v1079
        %1087 = vst [vmem:[%s300 + $0x8] sm:$0xff] %v1081
        %1088 = vst [vmem:[%s300 + $0x10] sm:$0xff] %v1083
        %1089 = vst [vmem:[%s300 + $0x18] sm:$0xff] %v1085
        %s1090 = sand.u32 %s187, 1
        %s1091 = scalar_lea.sflag [#allocation4], %s1090
        %s1092 = sand.u32 %s187, 1
        %s1093 = smul.addr %s1092, 32
        %s1094 = scalar_lea.vmem [#allocation5], %s1093
        // Predicated region
        $region53: #{tpu_custom_call.1} parent=47 // pred_check
          %p1095 = pneg %p197
        $region54: #{tpu_custom_call.1} parent=47 // pred_check_branch
          %1097 = sbr.rel (%p1095) target = $region56
        $region55: #{tpu_custom_call.1} parent=47 // pred_region
          %s1098 = smul.u32 4, %s22
          %s1100 = ssub.s32 512, 512
          %1101 = vsyncadd %s1091, %s1100
          %s1102 = smul.addr %s1098, 128
          %s1103 = scalar_lea.hbm %s7, %s1102
          %s1104 = sshll.u32 %s1094, 4
          %s1105 = int_to_ptr.vmem [resolvable:$true] %s1104
          %1110 = dma.vmem_to_hbm [thread:$0]  %s1105, 512, %s1103, %s1091, 128, 128, 8
        $region56: #{tpu_custom_call.1} parent=47 // pred_fallthru
          _
      $region48: #{tpu_custom_call.1} parent=5 // pred_fallthru
        _
      %p1111 = scmp.le.s32.totalorder 2, %s17
      // Predicated region
      $region57: #{tpu_custom_call.1} parent=5 // pred_check
        %p1112 = pneg %p1111
      $region58: #{tpu_custom_call.1} parent=5 // pred_check_branch
        %1114 = sbr.rel (%p1112) target = $region60
      $region59: #{tpu_custom_call.1} parent=5 // pred_region
        %s1115 = ssub.s32 %s17, 2
        // Predicated region
        $region61: #{tpu_custom_call.1} parent=59 // pred_check
          %p1116 = pneg %p203
        $region62: #{tpu_custom_call.1} parent=59 // pred_check_branch
          %1118 = sbr.rel (%p1116) target = $region64
        $region63: #{tpu_custom_call.1} parent=59 // pred_region
          %s1119 = sand.u32 %s188, 1
          %s1120 = scalar_lea.sflag [#allocation4], %s1119
          %s1121 = sand.u32 %s188, 1
          %s1122 = smul.addr %s1121, 32
          %s1123 = scalar_lea.vmem [#allocation5], %s1122
          %1124 = dma.done %s1120, 512
        $region64: #{tpu_custom_call.1} parent=59 // pred_fallthru
          _
      $region60: #{tpu_custom_call.1} parent=5 // pred_fallthru
        _
    $region6: #{tpu_custom_call.1} parent=1 // loop_footer
      %s21 = sadd.s32 1, %s17
    $region7: #{tpu_custom_call.1} parent=1 // loop_footer_branch
      %16 = sbr.rel target = $region3
    $region8: #{tpu_custom_call.1} parent=1 // loop_exit
      _
    %1125 = vsyncpa [#allocation3], 1
    %s1126 = scalar_lea.sflag [#allocation3], 1
    %1127 = vsyncpa %s1126, 1
    %1128 = vsyncpa [#allocation4], 1
    %s1129 = scalar_lea.sflag [#allocation4], 1
    %1130 = vsyncpa %s1129, 1

</llo_original>
